<compile_context>
chip_gen: v5e
topology: v5e:2x2
jax: 0.10.0
libtpu: 0.0.40
codegen_flags: <defaults>
</compile_context>

<pallas_src>
import jax
import jax.numpy as jnp
from jax import lax
from jax.experimental import pallas as pl
from jax.experimental.pallas import tpu as pltpu


def _vmem_capacity_bytes():
    """Physical VMEM of the local chip; conservative (v7x) default if unknown."""
    try:
        info = pltpu.get_tpu_info()
        cap = getattr(info, "vmem_capacity_bytes", None)
        if cap:
            return int(cap)
    except Exception:
        pass
    return 64 * 1024 * 1024


# ---------------------------------------------------------------------------
# Fused single-pass kernel: whole (C, L) slab resident in VMEM per batch elem.
# ---------------------------------------------------------------------------
def _make_fused_kernel(eps, inv_n):
    def kernel(x_ref, w_ref, b_ref, o_ref):
        x = x_ref[...].astype(jnp.float32)                     # (C, L)
        s = jnp.sum(x, keepdims=True)                          # (1, 1)
        ss = jnp.sum(x * x, keepdims=True)                     # (1, 1)
        mean = s * inv_n
        # NOTE: E[x^2] - mean^2 in f32; fine for activation-scale statistics.
        # TODO(synk): shifted accumulation if inputs can have |mean| >> std.
        var = jnp.maximum(ss * inv_n - mean * mean, 0.0)
        inv_std = lax.rsqrt(var + eps)
        w = w_ref[...].astype(jnp.float32)                     # (C, 1)
        b = b_ref[...].astype(jnp.float32)                     # (C, 1)
        scale = w * inv_std                                    # (C, 1)
        shift = b - mean * scale                               # (C, 1)
        o_ref[...] = (x * scale + shift).astype(o_ref.dtype)

    return kernel


# ---------------------------------------------------------------------------
# Two-pass kernels (large slabs).
# ---------------------------------------------------------------------------
def _make_stats_kernel(eps, inv_n, channels, l_tile, chunk, length, needs_mask):
    """Pass 1: VALU accumulation into (C, chunk) scratch -> folded (C,1) scale/shift."""
    n_chunks = l_tile // chunk

    def kernel(x_ref, w_ref, b_ref, scale_ref, shift_ref, s_acc, ss_acc):
        l = pl.program_id(1)

        @pl.when(l == 0)
        def _init():
            s_acc[...] = jnp.zeros_like(s_acc)
            ss_acc[...] = jnp.zeros_like(ss_acc)

        if needs_mask:
            # Hoisted once; per-chunk mask is a cheap VALU compare vs a scalar.
            col = lax.broadcasted_iota(jnp.int32, (channels, chunk), 1)

        # Pure VALU accumulation; the cross-lane/cross-sublane XLU reduction is
        # deferred to the finalize block (once per batch element).
        for j in range(n_chunks):
            xc = x_ref[:, j * chunk:(j + 1) * chunk].astype(jnp.float32)  # (C, chunk)
            if needs_mask:
                limit = length - l * l_tile - j * chunk        # traced scalar
                xc = jnp.where(col < limit, xc, 0.0)
            s_acc[...] += xc
            ss_acc[...] += xc * xc

        @pl.when(l == pl.num_programs(1) - 1)
        def _finalize():
            s = jnp.sum(s_acc[...], keepdims=True)             # (1, 1)
            ss = jnp.sum(ss_acc[...], keepdims=True)           # (1, 1)
            mean = s * inv_n
            var = jnp.maximum(ss * inv_n - mean * mean, 0.0)
            inv_std = lax.rsqrt(var + eps)
            w = w_ref[...].astype(jnp.float32)                 # (C, 1)
            b = b_ref[...].astype(jnp.float32)                 # (C, 1)
            scale = w * inv_std
            scale_ref[...] = scale
            shift_ref[...] = b - mean * scale

    return kernel


def _apply_kernel(x_ref, scale_ref, shift_ref, o_ref):
    """Pass 2: y = x * scale + shift with the per-batch folded affine."""
    x = x_ref[...]
    if x.dtype == jnp.bfloat16:
        # bf16 FMA halves the vreg working set on v6e/v7x; scale/shift were
        # computed in f32 so the statistics remain accurate.
        y = x * scale_ref[...].astype(jnp.bfloat16) + shift_ref[...].astype(jnp.bfloat16)
    else:
        y = x.astype(jnp.float32) * scale_ref[...] + shift_ref[...]
    o_ref[...] = y.astype(o_ref.dtype)


# ---------------------------------------------------------------------------
# Wrapper.
# ---------------------------------------------------------------------------
def global_layer_norm(x, weight, bias, eps=1e-5, *, force_two_pass=False):
    """x: (N, C, L); weight, bias: (C, 1). Returns (N, C, L)."""
    N, C, L = x.shape
    eps = float(eps)
    inv_n = 1.0 / float(C * L)
    itemsize = x.dtype.itemsize

    # Per-generation VMEM sizing (explicit vmem_limit_bytes on every call).
    vmem_cap = _vmem_capacity_bytes()              # 128 MiB v5e/v6e, 64 MiB v7x
    vmem_limit = (vmem_cap * 3) // 4               # headroom under physical VMEM
    budget = (vmem_limit * 3) // 4                 # headroom inside the scoped limit
    # Approx. VMEM bytes the pipeline needs per slab element: double-buffered
    # input + output plus ~2 f32 compute temporaries.
    per_elem = 4 * itemsize + 8

    # ---- Fused single-pass path: 2x|x| HBM traffic. ----
    if (not force_two_pass) and C * L * per_elem <= budget:
        return pl.pallas_call(
            _make_fused_kernel(eps, inv_n),
            out_shape=jax.ShapeDtypeStruct((N, C, L), x.dtype),
            grid_spec=pltpu.PrefetchScalarGridSpec(
                num_scalar_prefetch=0,
                grid=(N,),
                in_specs=[
                    pl.BlockSpec((None, C, L), lambda n: (n, 0, 0)),
                    pl.BlockSpec((C, 1), lambda n: (0, 0)),
                    pl.BlockSpec((C, 1), lambda n: (0, 0)),
                ],
                out_specs=pl.BlockSpec((None, C, L), lambda n: (n, 0, 0)),
            ),
            compiler_params=pltpu.CompilerParams(
                dimension_semantics=("parallel",),
                vmem_limit_bytes=vmem_limit),
        )(x, weight, bias)

    # ---- Two-pass path: cdiv L-tiling with a masked tail. ----
    if L < 128:
        l_tile = L                                  # full-dim block (always legal)
    else:
        lanes = budget // max(1, C * per_elem)
        lanes = max(128, min(lanes, 16384))         # cap bounds chunk unrolling
        lanes = (lanes // 128) * 128
        l_tile = min(lanes, (L // 128) * 128)
        if l_tile >= 512:
            l_tile = (l_tile // 512) * 512          # 512-lane chunks when large
    n_l = pl.cdiv(L, l_tile)
    chunk = 512 if (l_tile >= 512 and l_tile % 512 == 0) else min(128, l_tile)
    needs_mask = (L % l_tile) != 0

    scale, shift = pl.pallas_call(
        _make_stats_kernel(eps, inv_n, C, l_tile, chunk, L, needs_mask),
        out_shape=(
            jax.ShapeDtypeStruct((N, C, 1), jnp.float32),
            jax.ShapeDtypeStruct((N, C, 1), jnp.float32),
        ),
        grid_spec=pltpu.PrefetchScalarGridSpec(
            num_scalar_prefetch=0,
            grid=(N, n_l),
            in_specs=[
                pl.BlockSpec((None, C, l_tile), lambda n, l: (n, 0, l)),
                pl.BlockSpec((C, 1), lambda n, l: (0, 0)),
                pl.BlockSpec((C, 1), lambda n, l: (0, 0)),
            ],
            out_specs=(
                pl.BlockSpec((None, C, 1), lambda n, l: (n, 0, 0)),
                pl.BlockSpec((None, C, 1), lambda n, l: (n, 0, 0)),
            ),
            scratch_shapes=[
                pltpu.VMEM((C, chunk), jnp.float32),   # running sum
                pltpu.VMEM((C, chunk), jnp.float32),   # running sum of squares
            ],
        ),
        compiler_params=pltpu.CompilerParams(
            dimension_semantics=("parallel", "arbitrary"),
            vmem_limit_bytes=vmem_limit),
    )(x, weight, bias)

    return pl.pallas_call(
        _apply_kernel,
        out_shape=jax.ShapeDtypeStruct((N, C, L), x.dtype),
        grid_spec=pltpu.PrefetchScalarGridSpec(
            num_scalar_prefetch=0,
            grid=(N, n_l),
            in_specs=[
                pl.BlockSpec((None, C, l_tile), lambda n, l: (n, 0, l)),
                pl.BlockSpec((None, C, 1), lambda n, l: (n, 0, 0)),
                pl.BlockSpec((None, C, 1), lambda n, l: (n, 0, 0)),
            ],
            out_specs=pl.BlockSpec((None, C, l_tile), lambda n, l: (n, 0, l)),
        ),
        compiler_params=pltpu.CompilerParams(
            dimension_semantics=("parallel", "parallel"),
            vmem_limit_bytes=vmem_limit),
    )(x, scale, shift)


def global_layer_norm_ref(x, weight, bias, eps=1e-5):
    """Pure-JAX reference matching the PyTorch forward."""
    x32 = x.astype(jnp.float32)
    mean = jnp.mean(x32, axis=(1, 2), keepdims=True)
    var = jnp.mean((x32 - mean) ** 2, axis=(1, 2), keepdims=True)
    y = weight[None] * (x32 - mean) / jnp.sqrt(var + eps) + bias[None]
    return y.astype(x.dtype)


if __name__ == "__main__":
    key = jax.random.PRNGKey(0)
    kx1, kw1, kb1, kx2, kw2, kb2 = jax.random.split(key, 6)

    # Case 1: tiny slab -> fused single-pass path (grid=(N,), slab resident).
    N, C, L = 2, 4, 16
    x = jax.random.normal(kx1, (N, C, L), dtype=jnp.float32)
    weight = 1.0 + 0.1 * jax.random.normal(kw1, (C, 1), dtype=jnp.float32)
    bias = 0.1 * jax.random.normal(kb1, (C, 1), dtype=jnp.float32)
    out = jax.block_until_ready(global_layer_norm(x, weight, bias, eps=1e-5))
    ref = global_layer_norm_ref(x, weight, bias, eps=1e-5)
    assert out.shape == (N, C, L)
    assert jnp.allclose(out, ref, atol=1e-5, rtol=1e-5)

    # Case 2: force the two-pass path with a ragged L (exercises cdiv grid,
    # masked tail and multi-chunk VALU accumulation in the stats pass).
    N2, C2, L2 = 2, 8, 400
    x2 = jax.random.normal(kx2, (N2, C2, L2), dtype=jnp.float32)
    w2 = 1.0 + 0.1 * jax.random.normal(kw2, (C2, 1), dtype=jnp.float32)
    b2 = 0.1 * jax.random.normal(kb2, (C2, 1), dtype=jnp.float32)
    out2 = jax.block_until_ready(
        global_layer_norm(x2, w2, b2, eps=1e-5, force_two_pass=True))
    ref2 = global_layer_norm_ref(x2, w2, b2, eps=1e-5)
    assert out2.shape == (N2, C2, L2)
    assert jnp.allclose(out2, ref2, atol=1e-5, rtol=1e-5)

    print("KERNEL_OK")
</pallas_src>

<mosaic_0001>
module attributes {stable_mosaic.version = 11 : i64} {
  func.func @kernel(%arg0: i32, %arg1: memref<1x4x16xf32, #tpu.memory_space<vmem>>, %arg2: memref<4x1xf32, #tpu.memory_space<vmem>>, %arg3: memref<4x1xf32, #tpu.memory_space<vmem>>, %arg4: memref<1x4x16xf32, #tpu.memory_space<vmem>>) attributes {dimension_semantics = [#tpu.dimension_semantics<parallel>], iteration_bounds = array<i64: 2>, scalar_prefetch = 0 : i64, scratch_operands = 0 : i64, tpu.core_type = #tpu.core_type<tc>, window_params = [{transform_indices = @transform_0, window_bounds = array<i64: 1, 4, 16>}, {pipeline_mode = #tpu.pipeline_mode<synchronous>, transform_indices = @transform_1, window_bounds = array<i64: 4, 1>}, {pipeline_mode = #tpu.pipeline_mode<synchronous>, transform_indices = @transform_2, window_bounds = array<i64: 4, 1>}, {transform_indices = @transform_3, window_bounds = array<i64: 1, 4, 16>}]} {
    %c0 = arith.constant 0 : index
    %c0_0 = arith.constant 0 : index
    %c0_1 = arith.constant 0 : index
    %0 = vector.load %arg1[%c0, %c0_0, %c0_1] : memref<1x4x16xf32, #tpu.memory_space<vmem>>, vector<1x4x16xf32>
    %1 = vector.shape_cast %0 : vector<1x4x16xf32> to vector<4x16xf32>
    %2 = vector.shape_cast %1 : vector<4x16xf32> to vector<1x4x16xf32>
    %cst = arith.constant dense<0.000000e+00> : vector<1xf32>
    %3 = vector.multi_reduction <add>, %2, %cst [1, 2] : vector<1x4x16xf32> to vector<1xf32>
    %4 = vector.shape_cast %3 : vector<1xf32> to vector<1x1x1xf32>
    %5 = vector.extract %4[0, 0, 0] : f32 from vector<1x1x1xf32>
    %6 = vector.broadcast %5 : f32 to vector<1x1xf32>
    %7 = arith.mulf %1, %1 : vector<4x16xf32>
    %8 = vector.shape_cast %7 : vector<4x16xf32> to vector<1x4x16xf32>
    %cst_2 = arith.constant dense<0.000000e+00> : vector<1xf32>
    %9 = vector.multi_reduction <add>, %8, %cst_2 [1, 2] : vector<1x4x16xf32> to vector<1xf32>
    %10 = vector.shape_cast %9 : vector<1xf32> to vector<1x1x1xf32>
    %11 = vector.extract %10[0, 0, 0] : f32 from vector<1x1x1xf32>
    %12 = vector.broadcast %11 : f32 to vector<1x1xf32>
    %cst_3 = arith.constant 1.562500e-02 : f32
    %13 = vector.broadcast %cst_3 : f32 to vector<1x1xf32>
    %14 = arith.mulf %6, %13 : vector<1x1xf32>
    %cst_4 = arith.constant 1.562500e-02 : f32
    %15 = vector.broadcast %cst_4 : f32 to vector<1x1xf32>
    %16 = arith.mulf %12, %15 : vector<1x1xf32>
    %17 = arith.mulf %14, %14 : vector<1x1xf32>
    %18 = arith.subf %16, %17 : vector<1x1xf32>
    %cst_5 = arith.constant 0.000000e+00 : f32
    %19 = vector.broadcast %cst_5 : f32 to vector<1x1xf32>
    %20 = arith.maximumf %18, %19 : vector<1x1xf32>
    %cst_6 = arith.constant 9.99999974E-6 : f32
    %21 = vector.broadcast %cst_6 : f32 to vector<1x1xf32>
    %22 = arith.addf %20, %21 : vector<1x1xf32>
    %23 = math.rsqrt %22 : vector<1x1xf32>
    %c0_7 = arith.constant 0 : index
    %c0_8 = arith.constant 0 : index
    %24 = vector.load %arg2[%c0_7, %c0_8] : memref<4x1xf32, #tpu.memory_space<vmem>>, vector<4x1xf32>
    %c0_9 = arith.constant 0 : index
    %c0_10 = arith.constant 0 : index
    %25 = vector.load %arg3[%c0_9, %c0_10] : memref<4x1xf32, #tpu.memory_space<vmem>>, vector<4x1xf32>
    %26 = vector.broadcast %23 : vector<1x1xf32> to vector<4x1xf32>
    %27 = arith.mulf %24, %26 : vector<4x1xf32>
    %28 = vector.broadcast %14 : vector<1x1xf32> to vector<4x1xf32>
    %29 = arith.mulf %28, %27 : vector<4x1xf32>
    %30 = arith.subf %25, %29 : vector<4x1xf32>
    %31 = vector.broadcast %27 : vector<4x1xf32> to vector<4x16xf32>
    %32 = arith.mulf %1, %31 : vector<4x16xf32>
    %33 = vector.broadcast %30 : vector<4x1xf32> to vector<4x16xf32>
    %34 = arith.addf %32, %33 : vector<4x16xf32>
    %c0_11 = arith.constant 0 : index
    %c0_12 = arith.constant 0 : index
    %c0_13 = arith.constant 0 : index
    %35 = vector.load %arg4[%c0_11, %c0_12, %c0_13] : memref<1x4x16xf32, #tpu.memory_space<vmem>>, vector<1x4x16xf32>
    %36 = vector.shape_cast %35 : vector<1x4x16xf32> to vector<4x16xf32>
    %37 = vector.shape_cast %34 : vector<4x16xf32> to vector<1x4x16xf32>
    tpu.vector_store %arg4[%c0_11, %c0_12, %c0_13], %37 {strides = array<i32>} : memref<1x4x16xf32, #tpu.memory_space<vmem>>, vector<1x4x16xf32>,
    return
  }
  func.func @transform_0(%arg0: i32) -> (i32, i32, i32) {
    %c0_i32 = arith.constant 0 : i32
    %c0_i32_0 = arith.constant 0 : i32
    %c0_i32_1 = arith.constant 0 : i32
    return %arg0, %c0_i32, %c0_i32_0 : i32, i32, i32
  }
  func.func @transform_1(%arg0: i32) -> (i32, i32) {
    %c0_i32 = arith.constant 0 : i32
    %c0_i32_0 = arith.constant 0 : i32
    %c0_i32_1 = arith.constant 0 : i32
    return %c0_i32, %c0_i32_0 : i32, i32
  }
  func.func @transform_2(%arg0: i32) -> (i32, i32) {
    %c0_i32 = arith.constant 0 : i32
    %c0_i32_0 = arith.constant 0 : i32
    %c0_i32_1 = arith.constant 0 : i32
    return %c0_i32, %c0_i32_0 : i32, i32
  }
  func.func @transform_3(%arg0: i32) -> (i32, i32, i32) {
    %c0_i32 = arith.constant 0 : i32
    %c0_i32_0 = arith.constant 0 : i32
    %c0_i32_1 = arith.constant 0 : i32
    return %arg0, %c0_i32, %c0_i32_0 : i32, i32, i32
  }
}

</mosaic_0001>

<llo_original>
// kernel: tpu_custom_call.1
$region0: #{tpu_custom_call.1}
  #allocation0 [shape = 'u32[]', space=smem, size = 0x4, offset = 0x4, fixed_abs, tag = 'smem constant byte address 0x4 - core index']
  #allocation1 [shape = 'u32[72,128]{1,0:T(1,128)}', space=vmem, size = 0x9000, scoped, tag = 'internal scratch']
  %s0 = inlined_call_operand.vmem [shape: f32[2,4,16], index: 0, kind: input, shape index: {}]
  %s1 = inlined_call_operand.vmem [shape: f32[4,1], index: 1, kind: input, shape index: {}]
  %s2 = inlined_call_operand.vmem [shape: f32[4,1], index: 2, kind: input, shape index: {}]
  %s3 = inlined_call_operand.hbm [shape: f32[2,4,16], index: 3, kind: output, shape index: {}]
  %s4 = sld [smem:[#allocation0]]
  $region45: #{tpu_custom_call.1} parent=0
    _
  %s6 = ssub.s32 1, %s4
  %s7 = scalar_select 0, %s6, %s4
  $region1: #{tpu_custom_call.1} parent=0
    #allocation2 [shape = 'u8[4096]{0}', space=vmem, size = 0x1000, scoped, tag = 'output window, operand 0']
    #allocation3 [shape = 's32[2]{0}', space=sflag, size = 0x8, scoped, tag = 'scoped memory for tpu_custom_call.1']
    %8 = vsyncpa [#allocation3], 0
    %s9 = scalar_lea.sflag [#allocation3], 1
    %10 = vsyncpa %s9, 0
    loop: start=0, step=1, limit=4
    $region2: #{tpu_custom_call.1} parent=1 // loop_pre_header
      _
    $region3: #{tpu_custom_call.1} parent=1 // loop_header
      %s12 = sphi 0, %s16
      %p13 = scmp.ge.s32.totalorder %s12, 4
      %s22 = sphi 0, %s24
      %s25 = sphi 0, %s22
      %s26 = sphi 0, %s25
      %s42 = sphi 0, %s26
      %s46 = sphi 0, %s46
      %s48 = sphi 0, %s46
      %s49 = sphi 0, %s48
      %s63 = sphi 0, %s49
      %s67 = sphi 0, %s67
      %s69 = sphi 0, %s67
      %s70 = sphi 0, %s69
      %s84 = sphi 0, %s70
      %s90 = sphi 0, %s92
      %s93 = sphi 0, %s90
      %s94 = sphi 0, %s93
      %s110 = sphi 0, %s94
    $region4: #{tpu_custom_call.1} parent=1 // loop_header_branch
      %15 = sbr.rel (%p13) target = $region8
    $region5: #{tpu_custom_call.1} parent=1 // loop_body
      %s17 = ssub.s32 %s12, 1
      %s18 = ssub.s32 %s12, 2
      %s19 = sadd.s32 %s12, 1
      %s20 = ssub.s32 %s12, %s19
      %p21 = scmp.eq.s32.totalorder %s20, 0
      %s23 = sadd.s32 %s22, 1
      %s24 = scalar_select %p21, %s22, %s23
      %p27 = pneg %p21
      %p28 = scmp.eq.s32.totalorder %s12, 1
      %p29 = por %p27, %p28
      %p30 = scmp.ne.s32.totalorder %s22, %s25
      %p31 = scmp.eq.s32.totalorder %s12, 0
      %p32 = por %p30, %p31
      %p33 = scmp.ne.s32.totalorder %s22, %s25
      %p34 = scmp.eq.s32.totalorder %s17, 1
      %p35 = por %p33, %p34
      %p36 = scmp.ne.s32.totalorder %s25, %s26
      %p37 = scmp.eq.s32.totalorder %s17, 0
      %p38 = por %p36, %p37
      %p39 = scmp.ne.s32.totalorder %s25, %s26
      %p40 = scmp.eq.s32.totalorder %s18, 1
      %p41 = por %p39, %p40
      %p43 = scmp.ne.s32.totalorder %s26, %s42
      %p44 = scmp.eq.s32.totalorder %s18, 0
      %p45 = por %p43, %p44
      %s47 = sadd.s32 %s46, 1
      %p50 = scmp.eq.s32.totalorder %s12, 1
      %p51 = scmp.ne.s32.totalorder %s46, %s48
      %p52 = scmp.eq.s32.totalorder %s12, 0
      %p53 = por %p51, %p52
      %p54 = scmp.ne.s32.totalorder %s46, %s48
      %p55 = scmp.eq.s32.totalorder %s17, 1
      %p56 = por %p54, %p55
      %p57 = scmp.ne.s32.totalorder %s48, %s49
      %p58 = scmp.eq.s32.totalorder %s17, 0
      %p59 = por %p57, %p58
      %p60 = scmp.ne.s32.totalorder %s48, %s49
      %p61 = scmp.eq.s32.totalorder %s18, 1
      %p62 = por %p60, %p61
      %p64 = scmp.ne.s32.totalorder %s49, %s63
      %p65 = scmp.eq.s32.totalorder %s18, 0
      %p66 = por %p64, %p65
      %s68 = sadd.s32 %s67, 1
      %p71 = scmp.eq.s32.totalorder %s12, 1
      %p72 = scmp.ne.s32.totalorder %s67, %s69
      %p73 = scmp.eq.s32.totalorder %s12, 0
      %p74 = por %p72, %p73
      %p75 = scmp.ne.s32.totalorder %s67, %s69
      %p76 = scmp.eq.s32.totalorder %s17, 1
      %p77 = por %p75, %p76
      %p78 = scmp.ne.s32.totalorder %s69, %s70
      %p79 = scmp.eq.s32.totalorder %s17, 0
      %p80 = por %p78, %p79
      %p81 = scmp.ne.s32.totalorder %s69, %s70
      %p82 = scmp.eq.s32.totalorder %s18, 1
      %p83 = por %p81, %p82
      %p85 = scmp.ne.s32.totalorder %s70, %s84
      %p86 = scmp.eq.s32.totalorder %s18, 0
      %p87 = por %p85, %p86
      %s88 = ssub.s32 %s12, %s19
      %p89 = scmp.eq.s32.totalorder %s88, 0
      %s91 = sadd.s32 %s90, 1
      %s92 = scalar_select %p89, %s90, %s91
      %p95 = pneg %p89
      %p96 = scmp.eq.s32.totalorder %s12, 1
      %p97 = por %p95, %p96
      %p98 = scmp.ne.s32.totalorder %s90, %s93
      %p99 = scmp.eq.s32.totalorder %s12, 0
      %p100 = por %p98, %p99
      %p101 = scmp.ne.s32.totalorder %s90, %s93
      %p102 = scmp.eq.s32.totalorder %s17, 1
      %p103 = por %p101, %p102
      %p104 = scmp.ne.s32.totalorder %s93, %s94
      %p105 = scmp.eq.s32.totalorder %s17, 0
      %p106 = por %p104, %p105
      %p107 = scmp.ne.s32.totalorder %s93, %s94
      %p108 = scmp.eq.s32.totalorder %s18, 1
      %p109 = por %p107, %p108
      %p111 = scmp.ne.s32.totalorder %s94, %s110
      %p112 = scmp.eq.s32.totalorder %s18, 0
      %p113 = por %p111, %p112
      %p114 = scmp.le.s32.totalorder 1, %s12
      %p115 = scmp.lt.s32.totalorder %s12, 3
      %p116 = pnand %p114, %p115
      %p117 = pneg %p116
      // Predicated region
      $region9: #{tpu_custom_call.1} parent=5 // pred_check
        _
      $region10: #{tpu_custom_call.1} parent=5 // pred_check_branch
        %119 = sbr.rel (%p116) target = $region12
      $region11: #{tpu_custom_call.1} parent=5 // pred_region
        %s120 = ssub.s32 %s12, 1
        // Predicated region
        $region13: #{tpu_custom_call.1} parent=11 // pred_check
          %p121 = pneg %p59
        $region14: #{tpu_custom_call.1} parent=11 // pred_check_branch
          %123 = sbr.rel (%p121) target = $region16
        $region15: #{tpu_custom_call.1} parent=11 // pred_region
          _
        $region16: #{tpu_custom_call.1} parent=11 // pred_fallthru
          _
        // Predicated region
        $region17: #{tpu_custom_call.1} parent=11 // pred_check
          %p124 = pneg %p80
        $region18: #{tpu_custom_call.1} parent=11 // pred_check_branch
          %126 = sbr.rel (%p124) target = $region20
        $region19: #{tpu_custom_call.1} parent=11 // pred_region
          _
        $region20: #{tpu_custom_call.1} parent=11 // pred_fallthru
          _
      $region12: #{tpu_custom_call.1} parent=5 // pred_fallthru
        _
      %p127 = scmp.lt.s32.totalorder %s12, 2
      // Predicated region
      $region21: #{tpu_custom_call.1} parent=5 // pred_check
        %p128 = pneg %p127
      $region22: #{tpu_custom_call.1} parent=5 // pred_check_branch
        %130 = sbr.rel (%p128) target = $region24
      $region23: #{tpu_custom_call.1} parent=5 // pred_region
        // Predicated region
        $region25: #{tpu_custom_call.1} parent=23 // pred_check
          %p131 = pneg %p32
        $region26: #{tpu_custom_call.1} parent=23 // pred_check_branch
          %133 = sbr.rel (%p131) target = $region28
        $region27: #{tpu_custom_call.1} parent=23 // pred_region
          %p134 = scmp.lt.s32.totalorder %s12, 1
          %s135 = scalar_select %p134, %s12, 1
          %s136 = smul.addr %s135, 4
          %s137 = scalar_lea.vmem %s0, %s136
        $region28: #{tpu_custom_call.1} parent=23 // pred_fallthru
          _
      $region24: #{tpu_custom_call.1} parent=5 // pred_fallthru
        _
      %p138 = scmp.le.s32.totalorder 1, %s12
      %p139 = scmp.lt.s32.totalorder %s12, 3
      %p140 = pnand %p138, %p139
      %p141 = pneg %p140
      // Predicated region
      $region29: #{tpu_custom_call.1} parent=5 // pred_check
        _
      $region30: #{tpu_custom_call.1} parent=5 // pred_check_branch
        %143 = sbr.rel (%p140) target = $region32
      $region31: #{tpu_custom_call.1} parent=5 // pred_region
        %s144 = ssub.s32 %s12, 1
        %p145 = scmp.lt.s32.totalorder %s17, 1
        %s146 = scalar_select %p145, %s17, 1
        %s147 = smul.addr %s146, 4
        %s148 = scalar_lea.vmem %s0, %s147
        %p149 = pneg %p38
        %p150 = pneg %p35
        %p151 = pneg %p59
        %p152 = pneg %p56
        %p153 = pneg %p80
        %p154 = pneg %p77
        %p155 = pneg %p106
        %p156 = pneg %p103
        %s157 = sand.u32 %s93, 1
        %s158 = scalar_lea.sflag [#allocation3], %s157
        %s159 = sand.u32 %s93, 1
        %s160 = smul.addr %s159, 4
        %s161 = scalar_lea.vmem [#allocation2], %s160
        %p162 = scmp.lt.s32.totalorder %s17, 1
        %s163 = scalar_select %p162, %s17, 1
        %s164 = smul.addr %s163, 4
        %s165 = scalar_lea.vmem %s0, %s164
        %v166 = vld [vmem:[%s165] sm:$0xf]
        %vm167 = vcmask 125952
        %v168 = vsel %vm167, %v166, 0.0
        %169 = vadd.xlane.f32.xlu0 %v168
        %v170 = vpop.xlane.xlu0 %169
        %v171 = vrot.slane %v170, 4
        %v172 = vadd.f32 %v170, %v171
        %v173 = vrot.slane %v172, 2
        %v174 = vadd.f32 %v172, %v173
        %v175 = vrot.slane %v174, 1
        %v176 = vadd.f32 %v174, %v175
        %s177 = vtos %v176
        %v178 = vstv %s177
        %v179 = vmul.f32 %v166, %v166
        %v180 = vsel %vm167, %v179, 0.0
        %181 = vadd.xlane.f32.xlu0 %v180
        %v182 = vpop.xlane.xlu0 %181
        %v183 = vrot.slane %v182, 4
        %v184 = vadd.f32 %v182, %v183
        %v185 = vrot.slane %v184, 2
        %v186 = vadd.f32 %v184, %v185
        %v187 = vrot.slane %v186, 1
        %v188 = vadd.f32 %v186, %v187
        %s189 = vtos %v188
        %v190 = vstv %s189
        %v191 = vmul.f32 %v178, 0.015625
        %v192 = vmul.f32 %v190, 0.015625
        %v193 = vmul.f32 %v191, %v191
        %v194 = vsub.f32 %v192, %v193
        %v195 = vmax.f32 %v194, 0.0
        %v196 = vadd.f32 %v195, 1e-05
        %v197 = vrsqrt.pop %v196
        %v198 = vmul.f32 %v197, %v196
        %v199 = vmul.f32 %v198, %v197
        %v200 = vmul.f32 0.5, %v199
        %v201 = vsub.f32 1.5, %v200
        %v202 = vmul.f32 %v197, %v201
        %vm203 = vweird.f32 %v196
        %vm204 = vweird.f32 %v197
        %vm205 = vmor %vm203, %vm204
        %v206 = vsel %vm205, %v197, %v202
        %v207 = vld [vmem:[%s1] sm:$0xf]
        %v208 = vld [vmem:[%s2] sm:$0xf]
        %v209 = vmul.f32 %v207, %v206
        %v210 = vmul.f32 %v191, %v209
        %v211 = vsub.f32 %v208, %v210
        %213 = vset.pattern.permute.xlu0 0
        %214 = vperm.xlu0 %213, %v209
        %v215 = vpop.permute.xlu0 %214
        %v217 = vmul.f32 %v166, %v215
        %219 = vset.pattern.permute.xlu0 0
        %220 = vperm.xlu0 %219, %v211
        %v221 = vpop.permute.xlu0 %220
        %v223 = vadd.f32 %v217, %v221
        %224 = vst.msk [vmem:[%s161] sm:$0xf] %vm167, %v223
        %s225 = sand.u32 %s93, 1
        %s226 = scalar_lea.sflag [#allocation3], %s225
        %s227 = sand.u32 %s93, 1
        %s228 = smul.addr %s227, 4
        %s229 = scalar_lea.vmem [#allocation2], %s228
        // Predicated region
        $region33: #{tpu_custom_call.1} parent=31 // pred_check
          %p230 = pneg %p103
        $region34: #{tpu_custom_call.1} parent=31 // pred_check_branch
          %232 = sbr.rel (%p230) target = $region36
        $region35: #{tpu_custom_call.1} parent=31 // pred_region
          %234 = vsyncadd %s226, 0
          %s235 = smul.addr %s17, 4
          %s236 = scalar_lea.hbm %s3, %s235
          %s238 = sshll.u32 %s229, 4
          %s239 = int_to_ptr.vmem [resolvable:$true] %s238
          %s240 = sshll.u32 %s236, 4
          %s241 = int_to_ptr.hbm [resolvable:$true] %s240
          %243 = dma.vmem_to_hbm [thread:$0]  %s239, 64, %s241, %s226
        $region36: #{tpu_custom_call.1} parent=31 // pred_fallthru
          _
      $region32: #{tpu_custom_call.1} parent=5 // pred_fallthru
        _
      %p244 = scmp.le.s32.totalorder 2, %s12
      // Predicated region
      $region37: #{tpu_custom_call.1} parent=5 // pred_check
        %p245 = pneg %p244
      $region38: #{tpu_custom_call.1} parent=5 // pred_check_branch
        %247 = sbr.rel (%p245) target = $region40
      $region39: #{tpu_custom_call.1} parent=5 // pred_region
        %s248 = ssub.s32 %s12, 2
        // Predicated region
        $region41: #{tpu_custom_call.1} parent=39 // pred_check
          %p249 = pneg %p109
        $region42: #{tpu_custom_call.1} parent=39 // pred_check_branch
          %251 = sbr.rel (%p249) target = $region44
        $region43: #{tpu_custom_call.1} parent=39 // pred_region
          %s252 = sand.u32 %s94, 1
          %s253 = scalar_lea.sflag [#allocation3], %s252
          %s254 = sand.u32 %s94, 1
          %s255 = smul.addr %s254, 4
          %s256 = scalar_lea.vmem [#allocation2], %s255
          %258 = dma.done %s253, 64
        $region44: #{tpu_custom_call.1} parent=39 // pred_fallthru
          _
      $region40: #{tpu_custom_call.1} parent=5 // pred_fallthru
        _
    $region6: #{tpu_custom_call.1} parent=1 // loop_footer
      %s16 = sadd.s32 1, %s12
    $region7: #{tpu_custom_call.1} parent=1 // loop_footer_branch
      %11 = sbr.rel target = $region3
    $region8: #{tpu_custom_call.1} parent=1 // loop_exit
      _
    %259 = vsyncpa [#allocation3], 1
    %s260 = scalar_lea.sflag [#allocation3], 1
    %261 = vsyncpa %s260, 1

</llo_original>
